<compile_context>
chip_gen: v6e
topology: v6e:2x2x1
jax: 0.10.0
libtpu: 0.0.40
codegen_flags: <defaults>
</compile_context>

<pallas_src>
import math

import jax
import jax.numpy as jnp
from jax.experimental import pallas as pl
from jax.experimental.pallas import tpu as pltpu

HS = (64, 32)                 # hidden sizes of the critic MLP
MAX_TILE_B = 2048             # upper bound on the batch tile (rows / MXU M)
PER_BUFFER_BUDGET = 6 << 20   # VMEM bytes per pipeline buffer of the x stream


def _critic_kernel(x_ref, w1_ref, b1_ref, w2_ref, b2_ref, w3_ref, b3_ref, o_ref):
    """Fused 3-layer MLP; batch on the sublane (row / MXU-M) axis.

    x_ref : (tile_b, in_dim)  streamed activation tile (bf16 or f32).
    w1_ref: (in_dim, 64)      layer-1 weight, same dtype as x, VMEM-resident.
    b1_ref: (1, 64) f32, w2_ref: (64, 32) f32, b2_ref: (1, 32) f32,
    w3_ref: (32, 1) f32       -- all VMEM-resident across grid steps.
    b3_ref: (1,) f32 scalar in SMEM.
    o_ref : (tile_b, 1) f32.
    """
    h1 = jnp.tanh(
        jnp.dot(x_ref[...], w1_ref[...], preferred_element_type=jnp.float32)
        + b1_ref[...]
    )
    h2 = jnp.tanh(
        jnp.dot(h1, w2_ref[...], preferred_element_type=jnp.float32) + b2_ref[...]
    )
    v = jnp.dot(h2, w3_ref[...], preferred_element_type=jnp.float32) + b3_ref[0]
    o_ref[...] = v.astype(o_ref.dtype)


def _choose_tiling(batch, in_dim, itemsize):
    """Pick (tile_b, grid_steps) from the streamed-tile VMEM budget."""
    bytes_per_row = max(1, in_dim * itemsize)
    max_tb = (PER_BUFFER_BUDGET // bytes_per_row) // 16 * 16
    max_tb = max(16, min(MAX_TILE_B, max_tb))
    steps = pl.cdiv(batch, max_tb)
    if batch >= 32:
        # >=2 steps so the "parallel" batch axis can shard across both
        # TensorCores on v7x (no-op on single-TC v5e/v6e).
        steps = max(steps, 2)
    if steps == 1:
        # Full-extent block: always layout-legal (block dims == array dims),
        # no padding, no masking needed.
        return batch, 1
    tile_b = ((pl.cdiv(batch, steps) + 15) // 16) * 16   # sublane/bf16-pack aligned
    return tile_b, pl.cdiv(batch, tile_b)


def minigrid_critic_forward(state, params, *, compute_dtype=jnp.bfloat16):
    """Pallas implementation of MinigridCriticNet.forward (cnn=False path).

    Args:
      state: (..., C, H, W) float array; the last 3 dims are flattened.
      params: dict with PyTorch-shaped weights w1 (64, in_dim), w2 (32, 64),
              w3 (1, 32) and biases b1 (64,), b2 (32,), b3 (1,).
    Returns:
      value: (..., 1) float32 (or (1,) if state has no leading batch dims).
    """
    lead = state.shape[:-3]
    in_dim = math.prod(state.shape[-3:])
    batch = math.prod(lead) if lead else 1

    # Free row-major reshape + fusible dtype cast -- no transpose, no pad.
    x = state.reshape(batch, in_dim).astype(compute_dtype)

    # Weights are tiny (~hundreds of KiB); pre-transpose/cast once here so the
    # kernel runs plain NN-layout matmuls.
    w1t = params["w1"].T.astype(compute_dtype)              # (in_dim, 64)
    b1 = params["b1"].reshape(1, -1).astype(jnp.float32)    # (1, 64)
    w2t = params["w2"].T.astype(jnp.float32)                # (64, 32)
    b2 = params["b2"].reshape(1, -1).astype(jnp.float32)    # (1, 32)
    w3t = params["w3"].T.astype(jnp.float32)                # (32, 1)
    b3 = params["b3"].reshape(1).astype(jnp.float32)        # (1,) scalar -> SMEM

    tile_b, steps = _choose_tiling(batch, in_dim, x.dtype.itemsize)

    def resident(arr):
        # Constant index_map => stays VMEM-resident, no re-DMA across steps.
        return pl.BlockSpec(arr.shape, lambda i: (0, 0))

    out = pl.pallas_call(
        _critic_kernel,
        out_shape=jax.ShapeDtypeStruct((batch, 1), jnp.float32),
        grid=(steps,),
        in_specs=[
            pl.BlockSpec((tile_b, in_dim), lambda i: (i, 0)),   # streamed x
            resident(w1t), resident(b1),
            resident(w2t), resident(b2),
            resident(w3t),
            pl.BlockSpec(memory_space=pltpu.MemorySpace.SMEM),  # scalar b3
        ],
        out_specs=pl.BlockSpec((tile_b, 1), lambda i: (i, 0)),
        compiler_params=pltpu.CompilerParams(
            dimension_semantics=("parallel",),
            vmem_limit_bytes=32 * 1024 * 1024,
        ),
    )(x, w1t, b1, w2t, b2, w3t, b3)

    return out.reshape(*lead, 1) if lead else out.reshape(1)


def init_params(key, in_dim, hidden=HS):
    """Deterministic synthetic parameters (PyTorch nn.Linear (out, in) layout)."""
    k = jax.random.split(key, 6)
    scale = 0.1

    def lin(kw, kb, fan_out, fan_in):
        w = scale * jax.random.normal(kw, (fan_out, fan_in), dtype=jnp.float32)
        b = scale * jax.random.normal(kb, (fan_out,), dtype=jnp.float32)
        return w, b

    w1, b1 = lin(k[0], k[1], hidden[0], in_dim)
    w2, b2 = lin(k[2], k[3], hidden[1], hidden[0])
    w3, b3 = lin(k[4], k[5], 1, hidden[1])
    return {"w1": w1, "b1": b1, "w2": w2, "b2": b2, "w3": w3, "b3": b3}


def _reference_forward(state, p):
    lead = state.shape[:-3]
    x = state.reshape((*lead, -1)) if lead else state.reshape(-1)
    h1 = jnp.tanh(x @ p["w1"].T + p["b1"])
    h2 = jnp.tanh(h1 @ p["w2"].T + p["b2"])
    return h2 @ p["w3"].T + p["b3"]


if __name__ == "__main__":
    key = jax.random.PRNGKey(0)
    kx, kp = jax.random.split(key)

    batch, channels, height, width = 2, 4, 16, 16
    state = jax.random.normal(kx, (batch, channels, height, width), dtype=jnp.float32)
    params = init_params(kp, channels * height * width)

    value = minigrid_critic_forward(state, params)
    value = jax.block_until_ready(value)

    value_ref = _reference_forward(state, params)
    assert value.shape == (batch, 1)
    # Tolerance loosened vs the pure-f32 version because layer 1 streams bf16
    # operands (f32 accumulation keeps the value well-behaved).
    assert jnp.allclose(value, value_ref, atol=2e-2, rtol=2e-2), (
        float(jnp.max(jnp.abs(value - value_ref))))

    print("KERNEL_OK")
</pallas_src>

<mosaic_0001>
module attributes {stable_mosaic.version = 11 : i64} {
  func.func @_critic_kernel(%arg0: i32, %arg1: memref<2x1024xbf16, #tpu.memory_space<vmem>>, %arg2: memref<1024x64xbf16, #tpu.memory_space<vmem>>, %arg3: memref<1x64xf32, #tpu.memory_space<vmem>>, %arg4: memref<64x32xf32, #tpu.memory_space<vmem>>, %arg5: memref<1x32xf32, #tpu.memory_space<vmem>>, %arg6: memref<32x1xf32, #tpu.memory_space<vmem>>, %arg7: memref<1xf32, #tpu.memory_space<smem>>, %arg8: memref<2x1xf32, #tpu.memory_space<vmem>>) attributes {dimension_semantics = [#tpu.dimension_semantics<parallel>], iteration_bounds = array<i64: 1>, scalar_prefetch = 0 : i64, scratch_operands = 0 : i64, tpu.core_type = #tpu.core_type<tc>, window_params = [{transform_indices = @transform_0, window_bounds = array<i64: 2, 1024>}, {pipeline_mode = #tpu.pipeline_mode<synchronous>, transform_indices = @transform_1, window_bounds = array<i64: 1024, 64>}, {pipeline_mode = #tpu.pipeline_mode<synchronous>, transform_indices = @transform_2, window_bounds = array<i64: 1, 64>}, {pipeline_mode = #tpu.pipeline_mode<synchronous>, transform_indices = @transform_3, window_bounds = array<i64: 64, 32>}, {pipeline_mode = #tpu.pipeline_mode<synchronous>, transform_indices = @transform_4, window_bounds = array<i64: 1, 32>}, {pipeline_mode = #tpu.pipeline_mode<synchronous>, transform_indices = @transform_5, window_bounds = array<i64: 32, 1>}, {transform_indices = @transform_6, window_bounds = array<i64: 1>}, {transform_indices = @transform_7, window_bounds = array<i64: 2, 1>}]} {
    %c0 = arith.constant 0 : index
    %c0_0 = arith.constant 0 : index
    %0 = vector.load %arg1[%c0, %c0_0] : memref<2x1024xbf16, #tpu.memory_space<vmem>>, vector<2x1024xbf16>
    %c0_1 = arith.constant 0 : index
    %c0_2 = arith.constant 0 : index
    %1 = vector.load %arg2[%c0_1, %c0_2] : memref<1024x64xbf16, #tpu.memory_space<vmem>>, vector<1024x64xbf16>
    %cst = arith.constant dense<0.000000e+00> : vector<2x64xf32>
    %2 = tpu.matmul %0, %1, %cst {dimension_numbers = #tpu.dot_dimension_numbers<[1], [0], [0], [1], [0, 0, 1, 1], [], []>} : vector<2x1024xbf16>, vector<1024x64xbf16>, vector<2x64xf32> -> vector<2x64xf32>
    %c0_3 = arith.constant 0 : index
    %c0_4 = arith.constant 0 : index
    %3 = vector.load %arg3[%c0_3, %c0_4] : memref<1x64xf32, #tpu.memory_space<vmem>>, vector<1x64xf32>
    %4 = vector.broadcast %3 : vector<1x64xf32> to vector<2x64xf32>
    %5 = arith.addf %2, %4 : vector<2x64xf32>
    %6 = math.tanh %5 : vector<2x64xf32>
    %c0_5 = arith.constant 0 : index
    %c0_6 = arith.constant 0 : index
    %7 = vector.load %arg4[%c0_5, %c0_6] : memref<64x32xf32, #tpu.memory_space<vmem>>, vector<64x32xf32>
    %cst_7 = arith.constant dense<0.000000e+00> : vector<2x32xf32>
    %8 = tpu.matmul %6, %7, %cst_7 {dimension_numbers = #tpu.dot_dimension_numbers<[1], [0], [0], [1], [0, 0, 1, 1], [], []>} : vector<2x64xf32>, vector<64x32xf32>, vector<2x32xf32> -> vector<2x32xf32>
    %c0_8 = arith.constant 0 : index
    %c0_9 = arith.constant 0 : index
    %9 = vector.load %arg5[%c0_8, %c0_9] : memref<1x32xf32, #tpu.memory_space<vmem>>, vector<1x32xf32>
    %10 = vector.broadcast %9 : vector<1x32xf32> to vector<2x32xf32>
    %11 = arith.addf %8, %10 : vector<2x32xf32>
    %12 = math.tanh %11 : vector<2x32xf32>
    %c0_10 = arith.constant 0 : index
    %c0_11 = arith.constant 0 : index
    %13 = vector.load %arg6[%c0_10, %c0_11] : memref<32x1xf32, #tpu.memory_space<vmem>>, vector<32x1xf32>
    %cst_12 = arith.constant dense<0.000000e+00> : vector<2x1xf32>
    %14 = tpu.matmul %12, %13, %cst_12 {dimension_numbers = #tpu.dot_dimension_numbers<[1], [0], [0], [1], [0, 0, 1, 1], [], []>} : vector<2x32xf32>, vector<32x1xf32>, vector<2x1xf32> -> vector<2x1xf32>
    %c0_13 = arith.constant 0 : index
    %15 = memref.load %arg7[%c0_13] : memref<1xf32, #tpu.memory_space<smem>>
    %16 = vector.broadcast %15 : f32 to vector<2x1xf32>
    %17 = arith.addf %14, %16 : vector<2x1xf32>
    %c0_14 = arith.constant 0 : index
    %c0_15 = arith.constant 0 : index
    %18 = vector.load %arg8[%c0_14, %c0_15] : memref<2x1xf32, #tpu.memory_space<vmem>>, vector<2x1xf32>
    tpu.vector_store %arg8[%c0_14, %c0_15], %17 {strides = array<i32>} : memref<2x1xf32, #tpu.memory_space<vmem>>, vector<2x1xf32>,
    return
  }
  func.func @transform_0(%arg0: i32) -> (i32, i32) {
    %c0_i32 = arith.constant 0 : i32
    %c0_i32_0 = arith.constant 0 : i32
    return %arg0, %c0_i32 : i32, i32
  }
  func.func @transform_1(%arg0: i32) -> (i32, i32) {
    %c0_i32 = arith.constant 0 : i32
    %c0_i32_0 = arith.constant 0 : i32
    %c0_i32_1 = arith.constant 0 : i32
    return %c0_i32, %c0_i32_0 : i32, i32
  }
  func.func @transform_2(%arg0: i32) -> (i32, i32) {
    %c0_i32 = arith.constant 0 : i32
    %c0_i32_0 = arith.constant 0 : i32
    %c0_i32_1 = arith.constant 0 : i32
    return %c0_i32, %c0_i32_0 : i32, i32
  }
  func.func @transform_3(%arg0: i32) -> (i32, i32) {
    %c0_i32 = arith.constant 0 : i32
    %c0_i32_0 = arith.constant 0 : i32
    %c0_i32_1 = arith.constant 0 : i32
    return %c0_i32, %c0_i32_0 : i32, i32
  }
  func.func @transform_4(%arg0: i32) -> (i32, i32) {
    %c0_i32 = arith.constant 0 : i32
    %c0_i32_0 = arith.constant 0 : i32
    %c0_i32_1 = arith.constant 0 : i32
    return %c0_i32, %c0_i32_0 : i32, i32
  }
  func.func @transform_5(%arg0: i32) -> (i32, i32) {
    %c0_i32 = arith.constant 0 : i32
    %c0_i32_0 = arith.constant 0 : i32
    %c0_i32_1 = arith.constant 0 : i32
    return %c0_i32, %c0_i32_0 : i32, i32
  }
  func.func @transform_6(%arg0: i32) -> i32 {
    %c0_i32 = arith.constant 0 : i32
    %c0_i32_0 = arith.constant 0 : i32
    return %c0_i32 : i32
  }
  func.func @transform_7(%arg0: i32) -> (i32, i32) {
    %c0_i32 = arith.constant 0 : i32
    %c0_i32_0 = arith.constant 0 : i32
    return %arg0, %c0_i32 : i32, i32
  }
}

</mosaic_0001>

<llo_original>
// kernel: tpu_custom_call.1
$region0: #{tpu_custom_call.1}
  #allocation0 [shape = 'u32[]', space=smem, size = 0x4, offset = 0x4, fixed_abs, tag = 'smem constant byte address 0x4 - core index']
  #allocation1 [shape = 'u32[144,128]{1,0:T(1,128)}', space=vmem, size = 0x12000, scoped, tag = 'internal scratch']
  #allocation2 [shape = 'f32[1]{0:T(128)S(6)}', space=smem, size = 0x200, scoped, tag = 'scoped memory for tpu_custom_call.1']
  %s0 = inlined_call_operand.vmem [shape: bf16[2,1024], index: 0, kind: input, shape index: {}]
  %s1 = inlined_call_operand.vmem [shape: bf16[1024,64], index: 1, kind: input, shape index: {}]
  %s2 = inlined_call_operand.vmem [shape: f32[1,64], index: 2, kind: input, shape index: {}]
  %s3 = inlined_call_operand.vmem [shape: f32[64,32], index: 3, kind: input, shape index: {}]
  %s4 = inlined_call_operand.vmem [shape: f32[1,32], index: 4, kind: input, shape index: {}]
  %s5 = inlined_call_operand.vmem [shape: f32[32,1], index: 5, kind: input, shape index: {}]
  %s6 = inlined_call_operand.<no memory space> [shape: f32[1], index: 6, kind: input, shape index: {}]
  %s7 = inlined_call_operand.vmem [shape: f32[2,1], index: 7, kind: output, shape index: {}]
  %s8 = sld [smem:[#allocation0]]
  $region38: #{tpu_custom_call.1} parent=0
    _
  %s10 = ssub.s32 1, %s8
  %s11 = scalar_select 0, %s10, %s8
  %12 = sst [smem:[#allocation2]] %s6
  // Predicated region
  $region2: #{tpu_custom_call.1} parent=0 // pred_check
    _
  $region3: #{tpu_custom_call.1} parent=0 // pred_check_branch
    %14 = sbr.rel (0) target = $region5
  $region4: #{tpu_custom_call.1} parent=0 // pred_region
    _
  $region5: #{tpu_custom_call.1} parent=0 // pred_fallthru
    _
  // Predicated region
  $region6: #{tpu_custom_call.1} parent=0 // pred_check
    _
  $region7: #{tpu_custom_call.1} parent=0 // pred_check_branch
    %16 = sbr.rel (0) target = $region9
  $region8: #{tpu_custom_call.1} parent=0 // pred_region
    _
  $region9: #{tpu_custom_call.1} parent=0 // pred_fallthru
    _
  // Predicated region
  $region10: #{tpu_custom_call.1} parent=0 // pred_check
    _
  $region11: #{tpu_custom_call.1} parent=0 // pred_check_branch
    %18 = sbr.rel (0) target = $region13
  $region12: #{tpu_custom_call.1} parent=0 // pred_region
    _
  $region13: #{tpu_custom_call.1} parent=0 // pred_fallthru
    _
  // Predicated region
  $region14: #{tpu_custom_call.1} parent=0 // pred_check
    _
  $region15: #{tpu_custom_call.1} parent=0 // pred_check_branch
    %20 = sbr.rel (0) target = $region17
  $region16: #{tpu_custom_call.1} parent=0 // pred_region
    _
  $region17: #{tpu_custom_call.1} parent=0 // pred_fallthru
    _
  // Predicated region
  $region18: #{tpu_custom_call.1} parent=0 // pred_check
    _
  $region19: #{tpu_custom_call.1} parent=0 // pred_check_branch
    %22 = sbr.rel (0) target = $region21
  $region20: #{tpu_custom_call.1} parent=0 // pred_region
    _
  $region21: #{tpu_custom_call.1} parent=0 // pred_fallthru
    _
  // Predicated region
  $region22: #{tpu_custom_call.1} parent=0 // pred_check
    _
  $region23: #{tpu_custom_call.1} parent=0 // pred_check_branch
    %24 = sbr.rel (0) target = $region25
  $region24: #{tpu_custom_call.1} parent=0 // pred_region
    _
  $region25: #{tpu_custom_call.1} parent=0 // pred_fallthru
    _
  // Predicated region
  $region26: #{tpu_custom_call.1} parent=0 // pred_check
    _
  $region27: #{tpu_custom_call.1} parent=0 // pred_check_branch
    %26 = sbr.rel (0) target = $region29
  $region28: #{tpu_custom_call.1} parent=0 // pred_region
    _
  $region29: #{tpu_custom_call.1} parent=0 // pred_fallthru
    _
  %v28 = vld [vmem:[%s0] sm:$0xff]
  %v29 = vld [vmem:[%s1] sm:$0xf]
  %v30 = vld [vmem:[%s1 + $0x4] sm:$0xf]
  %v31 = vld [vmem:[%s1 + $0x8] sm:$0xf]
  %v32 = vld [vmem:[%s1 + $0xc] sm:$0xf]
  %v33 = vld [vmem:[%s1 + $0x10] sm:$0xf]
  %v34 = vld [vmem:[%s1 + $0x14] sm:$0xf]
  %v35 = vld [vmem:[%s1 + $0x18] sm:$0xf]
  %v36 = vld [vmem:[%s1 + $0x1c] sm:$0xf]
  %v37 = vld [vmem:[%s1 + $0x20] sm:$0xf]
  %v38 = vld [vmem:[%s1 + $0x24] sm:$0xf]
  %v39 = vld [vmem:[%s1 + $0x28] sm:$0xf]
  %v40 = vld [vmem:[%s1 + $0x2c] sm:$0xf]
  %v41 = vld [vmem:[%s1 + $0x30] sm:$0xf]
  %v42 = vld [vmem:[%s1 + $0x34] sm:$0xf]
  %v43 = vld [vmem:[%s1 + $0x38] sm:$0xf]
  %v44 = vld [vmem:[%s1 + $0x3c] sm:$0xf]
  %v45 = vld [vmem:[%s1 + $0x40] sm:$0xf]
  %v46 = vld [vmem:[%s1 + $0x44] sm:$0xf]
  %v47 = vld [vmem:[%s1 + $0x48] sm:$0xf]
  %v48 = vld [vmem:[%s1 + $0x4c] sm:$0xf]
  %v49 = vld [vmem:[%s1 + $0x50] sm:$0xf]
  %v50 = vld [vmem:[%s1 + $0x54] sm:$0xf]
  %v51 = vld [vmem:[%s1 + $0x58] sm:$0xf]
  %v52 = vld [vmem:[%s1 + $0x5c] sm:$0xf]
  %v53 = vld [vmem:[%s1 + $0x60] sm:$0xf]
  %v54 = vld [vmem:[%s1 + $0x64] sm:$0xf]
  %v55 = vld [vmem:[%s1 + $0x68] sm:$0xf]
  %v56 = vld [vmem:[%s1 + $0x6c] sm:$0xf]
  %v57 = vld [vmem:[%s1 + $0x70] sm:$0xf]
  %v58 = vld [vmem:[%s1 + $0x74] sm:$0xf]
  %v59 = vld [vmem:[%s1 + $0x78] sm:$0xf]
  %v60 = vld [vmem:[%s1 + $0x7c] sm:$0xf]
  %v61 = vld [vmem:[%s1 + $0x80] sm:$0xf]
  %v62 = vld [vmem:[%s1 + $0x84] sm:$0xf]
  %v63 = vld [vmem:[%s1 + $0x88] sm:$0xf]
  %v64 = vld [vmem:[%s1 + $0x8c] sm:$0xf]
  %v65 = vld [vmem:[%s1 + $0x90] sm:$0xf]
  %v66 = vld [vmem:[%s1 + $0x94] sm:$0xf]
  %v67 = vld [vmem:[%s1 + $0x98] sm:$0xf]
  %v68 = vld [vmem:[%s1 + $0x9c] sm:$0xf]
  %v69 = vld [vmem:[%s1 + $0xa0] sm:$0xf]
  %v70 = vld [vmem:[%s1 + $0xa4] sm:$0xf]
  %v71 = vld [vmem:[%s1 + $0xa8] sm:$0xf]
  %v72 = vld [vmem:[%s1 + $0xac] sm:$0xf]
  %v73 = vld [vmem:[%s1 + $0xb0] sm:$0xf]
  %v74 = vld [vmem:[%s1 + $0xb4] sm:$0xf]
  %v75 = vld [vmem:[%s1 + $0xb8] sm:$0xf]
  %v76 = vld [vmem:[%s1 + $0xbc] sm:$0xf]
  %v77 = vld [vmem:[%s1 + $0xc0] sm:$0xf]
  %v78 = vld [vmem:[%s1 + $0xc4] sm:$0xf]
  %v79 = vld [vmem:[%s1 + $0xc8] sm:$0xf]
  %v80 = vld [vmem:[%s1 + $0xcc] sm:$0xf]
  %v81 = vld [vmem:[%s1 + $0xd0] sm:$0xf]
  %v82 = vld [vmem:[%s1 + $0xd4] sm:$0xf]
  %v83 = vld [vmem:[%s1 + $0xd8] sm:$0xf]
  %v84 = vld [vmem:[%s1 + $0xdc] sm:$0xf]
  %v85 = vld [vmem:[%s1 + $0xe0] sm:$0xf]
  %v86 = vld [vmem:[%s1 + $0xe4] sm:$0xf]
  %v87 = vld [vmem:[%s1 + $0xe8] sm:$0xf]
  %v88 = vld [vmem:[%s1 + $0xec] sm:$0xf]
  %v89 = vld [vmem:[%s1 + $0xf0] sm:$0xf]
  %v90 = vld [vmem:[%s1 + $0xf4] sm:$0xf]
  %v91 = vld [vmem:[%s1 + $0xf8] sm:$0xf]
  %v92 = vld [vmem:[%s1 + $0xfc] sm:$0xf]
  %v93 = vld [vmem:[%s1 + $0x100] sm:$0xf]
  %v94 = vld [vmem:[%s1 + $0x104] sm:$0xf]
  %v95 = vld [vmem:[%s1 + $0x108] sm:$0xf]
  %v96 = vld [vmem:[%s1 + $0x10c] sm:$0xf]
  %v97 = vld [vmem:[%s1 + $0x110] sm:$0xf]
  %v98 = vld [vmem:[%s1 + $0x114] sm:$0xf]
  %v99 = vld [vmem:[%s1 + $0x118] sm:$0xf]
  %v100 = vld [vmem:[%s1 + $0x11c] sm:$0xf]
  %v101 = vld [vmem:[%s1 + $0x120] sm:$0xf]
  %v102 = vld [vmem:[%s1 + $0x124] sm:$0xf]
  %v103 = vld [vmem:[%s1 + $0x128] sm:$0xf]
  %v104 = vld [vmem:[%s1 + $0x12c] sm:$0xf]
  %v105 = vld [vmem:[%s1 + $0x130] sm:$0xf]
  %v106 = vld [vmem:[%s1 + $0x134] sm:$0xf]
  %v107 = vld [vmem:[%s1 + $0x138] sm:$0xf]
  %v108 = vld [vmem:[%s1 + $0x13c] sm:$0xf]
  %v109 = vld [vmem:[%s1 + $0x140] sm:$0xf]
  %v110 = vld [vmem:[%s1 + $0x144] sm:$0xf]
  %v111 = vld [vmem:[%s1 + $0x148] sm:$0xf]
  %v112 = vld [vmem:[%s1 + $0x14c] sm:$0xf]
  %v113 = vld [vmem:[%s1 + $0x150] sm:$0xf]
  %v114 = vld [vmem:[%s1 + $0x154] sm:$0xf]
  %v115 = vld [vmem:[%s1 + $0x158] sm:$0xf]
  %v116 = vld [vmem:[%s1 + $0x15c] sm:$0xf]
  %v117 = vld [vmem:[%s1 + $0x160] sm:$0xf]
  %v118 = vld [vmem:[%s1 + $0x164] sm:$0xf]
  %v119 = vld [vmem:[%s1 + $0x168] sm:$0xf]
  %v120 = vld [vmem:[%s1 + $0x16c] sm:$0xf]
  %v121 = vld [vmem:[%s1 + $0x170] sm:$0xf]
  %v122 = vld [vmem:[%s1 + $0x174] sm:$0xf]
  %v123 = vld [vmem:[%s1 + $0x178] sm:$0xf]
  %v124 = vld [vmem:[%s1 + $0x17c] sm:$0xf]
  %v125 = vld [vmem:[%s1 + $0x180] sm:$0xf]
  %v126 = vld [vmem:[%s1 + $0x184] sm:$0xf]
  %v127 = vld [vmem:[%s1 + $0x188] sm:$0xf]
  %v128 = vld [vmem:[%s1 + $0x18c] sm:$0xf]
  %v129 = vld [vmem:[%s1 + $0x190] sm:$0xf]
  %v130 = vld [vmem:[%s1 + $0x194] sm:$0xf]
  %v131 = vld [vmem:[%s1 + $0x198] sm:$0xf]
  %v132 = vld [vmem:[%s1 + $0x19c] sm:$0xf]
  %v133 = vld [vmem:[%s1 + $0x1a0] sm:$0xf]
  %v134 = vld [vmem:[%s1 + $0x1a4] sm:$0xf]
  %v135 = vld [vmem:[%s1 + $0x1a8] sm:$0xf]
  %v136 = vld [vmem:[%s1 + $0x1ac] sm:$0xf]
  %v137 = vld [vmem:[%s1 + $0x1b0] sm:$0xf]
  %v138 = vld [vmem:[%s1 + $0x1b4] sm:$0xf]
  %v139 = vld [vmem:[%s1 + $0x1b8] sm:$0xf]
  %v140 = vld [vmem:[%s1 + $0x1bc] sm:$0xf]
  %v141 = vld [vmem:[%s1 + $0x1c0] sm:$0xf]
  %v142 = vld [vmem:[%s1 + $0x1c4] sm:$0xf]
  %v143 = vld [vmem:[%s1 + $0x1c8] sm:$0xf]
  %v144 = vld [vmem:[%s1 + $0x1cc] sm:$0xf]
  %v145 = vld [vmem:[%s1 + $0x1d0] sm:$0xf]
  %v146 = vld [vmem:[%s1 + $0x1d4] sm:$0xf]
  %v147 = vld [vmem:[%s1 + $0x1d8] sm:$0xf]
  %v148 = vld [vmem:[%s1 + $0x1dc] sm:$0xf]
  %v149 = vld [vmem:[%s1 + $0x1e0] sm:$0xf]
  %v150 = vld [vmem:[%s1 + $0x1e4] sm:$0xf]
  %v151 = vld [vmem:[%s1 + $0x1e8] sm:$0xf]
  %v152 = vld [vmem:[%s1 + $0x1ec] sm:$0xf]
  %v153 = vld [vmem:[%s1 + $0x1f0] sm:$0xf]
  %v154 = vld [vmem:[%s1 + $0x1f4] sm:$0xf]
  %v155 = vld [vmem:[%s1 + $0x1f8] sm:$0xf]
  %v156 = vld [vmem:[%s1 + $0x1fc] sm:$0xf]
  %v157 = vld [vmem:[%s2] sm:$0x1]
  %v159 = vlaneseq
  %v160 = vshrl.u32 %v159, 7
  %v161 = vsub.s32 0, %v160
  %v162 = vrot.slane %v157, %v161
  %v165 = vcombine.high %v28, %v28
  %v167 = vunpack.c.l.s4 1966171168
  %v168 = vunpack.c.0.s8 %v167
  %v169 = vlaneseq
  %v170 = vshrl.u32 %v169, 7
  %v171 = vsub.s32 %v168, %v170
  %v172 = vrot.slane %v28, %v171
  %v174 = vunpack.c.l.s4 1966171168
  %v175 = vunpack.c.0.s8 %v174
  %v176 = vlaneseq
  %v177 = vshrl.u32 %v176, 7
  %v178 = vsub.s32 %v175, %v177
  %v179 = vrot.slane %v165, %v178
  %v180 = vcombine.high %v172, %v172
  %v181 = vcombine.high %v179, %v179
  %v183 = vunpack.c.l.s4 1966171168
  %v184 = vunpack.c.0.s8 %v183
  %v185 = vlaneseq
  %v186 = vshrl.u32 %v185, 7
  %v187 = vsub.s32 %v184, %v186
  %v188 = vrot.slane %v172, %v187
  %v190 = vunpack.c.l.s4 1966171168
  %v191 = vunpack.c.0.s8 %v190
  %v192 = vlaneseq
  %v193 = vshrl.u32 %v192, 7
  %v194 = vsub.s32 %v191, %v193
  %v195 = vrot.slane %v179, %v194
  %v197 = vunpack.c.l.s4 1966171168
  %v198 = vunpack.c.0.s8 %v197
  %v199 = vlaneseq
  %v200 = vshrl.u32 %v199, 7
  %v201 = vsub.s32 %v198, %v200
  %v202 = vrot.slane %v180, %v201
  %v204 = vunpack.c.l.s4 1966171168
  %v205 = vunpack.c.0.s8 %v204
  %v206 = vlaneseq
  %v207 = vshrl.u32 %v206, 7
  %v208 = vsub.s32 %v205, %v207
  %v209 = vrot.slane %v181, %v208
  %v210 = vcombine.high %v188, %v188
  %v211 = vcombine.high %v195, %v195
  %v212 = vcombine.high %v202, %v202
  %v213 = vcombine.high %v209, %v209
  %v350 = vunpack.c.l.b16 %v29
  %v351 = vunpack.c.l.b16 %v30
  %v352 = vunpack.c.l.b16 %v31
  %v353 = vunpack.c.l.b16 %v32
  %v354 = vunpack.c.l.b16 %v33
  %v355 = vunpack.c.l.b16 %v34
  %v356 = vunpack.c.l.b16 %v35
  %v357 = vunpack.c.l.b16 %v36
  %v358 = vunpack.c.l.b16 %v37
  %v359 = vunpack.c.l.b16 %v38
  %v360 = vunpack.c.l.b16 %v39
  %v361 = vunpack.c.l.b16 %v40
  %v362 = vunpack.c.l.b16 %v41
  %v363 = vunpack.c.l.b16 %v42
  %v364 = vunpack.c.l.b16 %v43
  %v365 = vunpack.c.l.b16 %v44
  %v366 = vunpack.c.l.b16 %v45
  %v367 = vunpack.c.l.b16 %v46
  %v368 = vunpack.c.l.b16 %v47
  %v369 = vunpack.c.l.b16 %v48
  %v370 = vunpack.c.l.b16 %v49
  %v371 = vunpack.c.l.b16 %v50
  %v372 = vunpack.c.l.b16 %v51
  %v373 = vunpack.c.l.b16 %v52
  %v374 = vunpack.c.l.b16 %v53
  %v375 = vunpack.c.l.b16 %v54
  %v376 = vunpack.c.l.b16 %v55
  %v377 = vunpack.c.l.b16 %v56
  %v378 = vunpack.c.l.b16 %v57
  %v379 = vunpack.c.l.b16 %v58
  %v380 = vunpack.c.l.b16 %v59
  %v381 = vunpack.c.l.b16 %v60
  %v382 = vunpack.c.l.b16 %v61
  %v383 = vunpack.c.l.b16 %v62
  %v384 = vunpack.c.l.b16 %v63
  %v385 = vunpack.c.l.b16 %v64
  %v386 = vunpack.c.l.b16 %v65
  %v387 = vunpack.c.l.b16 %v66
  %v388 = vunpack.c.l.b16 %v67
  %v389 = vunpack.c.l.b16 %v68
  %v390 = vunpack.c.l.b16 %v69
  %v391 = vunpack.c.l.b16 %v70
  %v392 = vunpack.c.l.b16 %v71
  %v393 = vunpack.c.l.b16 %v72
  %v394 = vunpack.c.l.b16 %v73
  %v395 = vunpack.c.l.b16 %v74
  %v396 = vunpack.c.l.b16 %v75
  %v397 = vunpack.c.l.b16 %v76
  %v398 = vunpack.c.l.b16 %v77
  %v399 = vunpack.c.l.b16 %v78
  %v400 = vunpack.c.l.b16 %v79
  %v401 = vunpack.c.l.b16 %v80
  %v402 = vunpack.c.l.b16 %v81
  %v403 = vunpack.c.l.b16 %v82
  %v404 = vunpack.c.l.b16 %v83
  %v405 = vunpack.c.l.b16 %v84
  %v406 = vunpack.c.l.b16 %v85
  %v407 = vunpack.c.l.b16 %v86
  %v408 = vunpack.c.l.b16 %v87
  %v409 = vunpack.c.l.b16 %v88
  %v410 = vunpack.c.l.b16 %v89
  %v411 = vunpack.c.l.b16 %v90
  %v412 = vunpack.c.l.b16 %v91
  %v413 = vunpack.c.l.b16 %v92
  %v414 = vunpack.c.l.b16 %v93
  %v415 = vunpack.c.l.b16 %v94
  %v416 = vunpack.c.l.b16 %v95
  %v417 = vunpack.c.l.b16 %v96
  %v418 = vunpack.c.l.b16 %v97
  %v419 = vunpack.c.l.b16 %v98
  %v420 = vunpack.c.l.b16 %v99
  %v421 = vunpack.c.l.b16 %v100
  %v422 = vunpack.c.l.b16 %v101
  %v423 = vunpack.c.l.b16 %v102
  %v424 = vunpack.c.l.b16 %v103
  %v425 = vunpack.c.l.b16 %v104
  %v426 = vunpack.c.l.b16 %v105
  %v427 = vunpack.c.l.b16 %v106
  %v428 = vunpack.c.l.b16 %v107
  %v429 = vunpack.c.l.b16 %v108
  %v430 = vunpack.c.l.b16 %v109
  %v431 = vunpack.c.l.b16 %v110
  %v432 = vunpack.c.l.b16 %v111
  %v433 = vunpack.c.l.b16 %v112
  %v434 = vunpack.c.l.b16 %v113
  %v435 = vunpack.c.l.b16 %v114
  %v436 = vunpack.c.l.b16 %v115
  %v437 = vunpack.c.l.b16 %v116
  %v438 = vunpack.c.l.b16 %v117
  %v439 = vunpack.c.l.b16 %v118
  %v440 = vunpack.c.l.b16 %v119
  %v441 = vunpack.c.l.b16 %v120
  %v442 = vunpack.c.l.b16 %v121
  %v443 = vunpack.c.l.b16 %v122
  %v444 = vunpack.c.l.b16 %v123
  %v445 = vunpack.c.l.b16 %v124
  %v446 = vunpack.c.l.b16 %v125
  %v447 = vunpack.c.l.b16 %v126
  %v448 = vunpack.c.l.b16 %v127
  %v449 = vunpack.c.l.b16 %v128
  %v450 = vunpack.c.l.b16 %v129
  %v451 = vunpack.c.l.b16 %v130
  %v452 = vunpack.c.l.b16 %v131
  %v453 = vunpack.c.l.b16 %v132
  %v454 = vunpack.c.l.b16 %v133
  %v455 = vunpack.c.l.b16 %v134
  %v456 = vunpack.c.l.b16 %v135
  %v457 = vunpack.c.l.b16 %v136
  %v458 = vunpack.c.l.b16 %v137
  %v459 = vunpack.c.l.b16 %v138
  %v460 = vunpack.c.l.b16 %v139
  %v461 = vunpack.c.l.b16 %v140
  %v462 = vunpack.c.l.b16 %v141
  %v463 = vunpack.c.l.b16 %v142
  %v464 = vunpack.c.l.b16 %v143
  %v465 = vunpack.c.l.b16 %v144
  %v466 = vunpack.c.l.b16 %v145
  %v467 = vunpack.c.l.b16 %v146
  %v468 = vunpack.c.l.b16 %v147
  %v469 = vunpack.c.l.b16 %v148
  %v470 = vunpack.c.l.b16 %v149
  %v471 = vunpack.c.l.b16 %v150
  %v472 = vunpack.c.l.b16 %v151
  %v473 = vunpack.c.l.b16 %v152
  %v474 = vunpack.c.l.b16 %v153
  %v475 = vunpack.c.l.b16 %v154
  %v476 = vunpack.c.l.b16 %v155
  %v477 = vunpack.c.l.b16 %v156
  %v478 = vpack.c.b16 %v351, %v350
  %v479 = vpack.c.b16 %v353, %v352
  %v480 = vpack.c.b16 %v355, %v354
  %v481 = vpack.c.b16 %v357, %v356
  %v482 = vpack.c.b16 %v359, %v358
  %v483 = vpack.c.b16 %v361, %v360
  %v484 = vpack.c.b16 %v363, %v362
  %v485 = vpack.c.b16 %v365, %v364
  %v486 = vpack.c.b16 %v367, %v366
  %v487 = vpack.c.b16 %v369, %v368
  %v488 = vpack.c.b16 %v371, %v370
  %v489 = vpack.c.b16 %v373, %v372
  %v490 = vpack.c.b16 %v375, %v374
  %v491 = vpack.c.b16 %v377, %v376
  %v492 = vpack.c.b16 %v379, %v378
  %v493 = vpack.c.b16 %v381, %v380
  %v494 = vpack.c.b16 %v383, %v382
  %v495 = vpack.c.b16 %v385, %v384
  %v496 = vpack.c.b16 %v387, %v386
  %v497 = vpack.c.b16 %v389, %v388
  %v498 = vpack.c.b16 %v391, %v390
  %v499 = vpack.c.b16 %v393, %v392
  %v500 = vpack.c.b16 %v395, %v394
  %v501 = vpack.c.b16 %v397, %v396
  %v502 = vpack.c.b16 %v399, %v398
  %v503 = vpack.c.b16 %v401, %v400
  %v504 = vpack.c.b16 %v403, %v402
  %v505 = vpack.c.b16 %v405, %v404
  %v506 = vpack.c.b16 %v407, %v406
  %v507 = vpack.c.b16 %v409, %v408
  %v508 = vpack.c.b16 %v411, %v410
  %v509 = vpack.c.b16 %v413, %v412
  %v510 = vpack.c.b16 %v415, %v414
  %v511 = vpack.c.b16 %v417, %v416
  %v512 = vpack.c.b16 %v419, %v418
  %v513 = vpack.c.b16 %v421, %v420
  %v514 = vpack.c.b16 %v423, %v422
  %v515 = vpack.c.b16 %v425, %v424
  %v516 = vpack.c.b16 %v427, %v426
  %v517 = vpack.c.b16 %v429, %v428
  %v518 = vpack.c.b16 %v431, %v430
  %v519 = vpack.c.b16 %v433, %v432
  %v520 = vpack.c.b16 %v435, %v434
  %v521 = vpack.c.b16 %v437, %v436
  %v522 = vpack.c.b16 %v439, %v438
  %v523 = vpack.c.b16 %v441, %v440
  %v524 = vpack.c.b16 %v443, %v442
  %v525 = vpack.c.b16 %v445, %v444
  %v526 = vpack.c.b16 %v447, %v446
  %v527 = vpack.c.b16 %v449, %v448
  %v528 = vpack.c.b16 %v451, %v450
  %v529 = vpack.c.b16 %v453, %v452
  %v530 = vpack.c.b16 %v455, %v454
  %v531 = vpack.c.b16 %v457, %v456
  %v532 = vpack.c.b16 %v459, %v458
  %v533 = vpack.c.b16 %v461, %v460
  %v534 = vpack.c.b16 %v463, %v462
  %v535 = vpack.c.b16 %v465, %v464
  %v536 = vpack.c.b16 %v467, %v466
  %v537 = vpack.c.b16 %v469, %v468
  %v538 = vpack.c.b16 %v471, %v470
  %v539 = vpack.c.b16 %v473, %v472
  %v540 = vpack.c.b16 %v475, %v474
  %v541 = vpack.c.b16 %v477, %v476
  %606 = vmatprep.subr.bf16.mxu0 0
  %607 = vmatpush1.bf16.msra.mxu0 %v485
  %608 = vmatprep.subr.bf16.mxu0 0
  %609 = vmatpush1.bf16.msra.mxu0 %v484
  %610 = vmatprep.subr.bf16.mxu0 0
  %611 = vmatpush1.bf16.msra.mxu0 %v483
  %612 = vmatprep.subr.bf16.mxu0 0
  %613 = vmatpush1.bf16.msra.mxu0 %v482
  %614 = vmatprep.subr.bf16.mxu0 0
  %615 = vmatpush1.bf16.msra.mxu0 %v481
  %616 = vmatprep.subr.bf16.mxu0 0
  %617 = vmatpush1.bf16.msra.mxu0 %v480
  %618 = vmatprep.subr.bf16.mxu0 0
  %619 = vmatpush1.bf16.msra.mxu0 %v479
  %620 = vmatprep.subr.bf16.mxu0 0
  %621 = vmatpush1.bf16.msra.mxu0 %v478
  %622 = vmatprep.subr.bf16.mxu0 0
  %623 = vmatpush2.bf16.msra.mxu0 %v493
  %624 = vmatprep.subr.bf16.mxu0 0
  %625 = vmatpush2.bf16.msra.mxu0 %v492
  %626 = vmatprep.subr.bf16.mxu0 0
  %627 = vmatpush2.bf16.msra.mxu0 %v491
  %628 = vmatprep.subr.bf16.mxu0 0
  %629 = vmatpush2.bf16.msra.mxu0 %v490
  %630 = vmatprep.subr.bf16.mxu0 0
  %631 = vmatpush2.bf16.msra.mxu0 %v489
  %632 = vmatprep.subr.bf16.mxu0 0
  %633 = vmatpush2.bf16.msra.mxu0 %v488
  %634 = vmatprep.subr.bf16.mxu0 0
  %635 = vmatpush2.bf16.msra.mxu0 %v487
  %636 = vmatprep.subr.bf16.mxu0 0
  %637 = vmatpush2.bf16.msra.mxu0 %v486
  %638 = vmatprep.mubr.bf16.mxu0 %v202
  %639 = vmatmul.mubr.bf16.gmra.mxu0 %v188
  %v640 = vpop.f32.mrf.mxu0
  %v641 = vadd.f32 %v162, %v640
  %v642 = vpop.f32.mrf.mxu0
  %v643 = vpop.f32.mrf.mxu0
  %v644 = vpop.f32.mrf.mxu0
  %645 = vdwg.mxu0
  %646 = vmatprep.subr.bf16.mxu0 0
  %647 = vmatpush1.bf16.msra.mxu0 %v501
  %648 = vmatprep.subr.bf16.mxu0 0
  %649 = vmatpush1.bf16.msra.mxu0 %v500
  %650 = vmatprep.subr.bf16.mxu0 0
  %651 = vmatpush1.bf16.msra.mxu0 %v499
  %652 = vmatprep.subr.bf16.mxu0 0
  %653 = vmatpush1.bf16.msra.mxu0 %v498
  %654 = vmatprep.subr.bf16.mxu0 0
  %655 = vmatpush1.bf16.msra.mxu0 %v497
  %656 = vmatprep.subr.bf16.mxu0 0
  %657 = vmatpush1.bf16.msra.mxu0 %v496
  %658 = vmatprep.subr.bf16.mxu0 0
  %659 = vmatpush1.bf16.msra.mxu0 %v495
  %660 = vmatprep.subr.bf16.mxu0 0
  %661 = vmatpush1.bf16.msra.mxu0 %v494
  %662 = vmatprep.subr.bf16.mxu0 0
  %663 = vmatpush2.bf16.msra.mxu0 %v509
  %664 = vmatprep.subr.bf16.mxu0 0
  %665 = vmatpush2.bf16.msra.mxu0 %v508
  %666 = vmatprep.subr.bf16.mxu0 0
  %667 = vmatpush2.bf16.msra.mxu0 %v507
  %668 = vmatprep.subr.bf16.mxu0 0
  %669 = vmatpush2.bf16.msra.mxu0 %v506
  %670 = vmatprep.subr.bf16.mxu0 0
  %671 = vmatpush2.bf16.msra.mxu0 %v505
  %672 = vmatprep.subr.bf16.mxu0 0
  %673 = vmatpush2.bf16.msra.mxu0 %v504
  %674 = vmatprep.subr.bf16.mxu0 0
  %675 = vmatpush2.bf16.msra.mxu0 %v503
  %676 = vmatprep.subr.bf16.mxu0 0
  %677 = vmatpush2.bf16.msra.mxu0 %v502
  %678 = vmatprep.mubr.bf16.mxu0 %v212
  %679 = vmatmul.mubr.bf16.gmra.mxu0 %v210
  %v680 = vpop.f32.mrf.mxu0
  %v681 = vadd.f32 %v641, %v680
  %v682 = vpop.f32.mrf.mxu0
  %v683 = vpop.f32.mrf.mxu0
  %v684 = vpop.f32.mrf.mxu0
  %685 = vdwg.mxu0
  %686 = vmatprep.subr.bf16.mxu0 0
  %687 = vmatpush1.bf16.msra.mxu0 %v517
  %688 = vmatprep.subr.bf16.mxu0 0
  %689 = vmatpush1.bf16.msra.mxu0 %v516
  %690 = vmatprep.subr.bf16.mxu0 0
  %691 = vmatpush1.bf16.msra.mxu0 %v515
  %692 = vmatprep.subr.bf16.mxu0 0
  %693 = vmatpush1.bf16.msra.mxu0 %v514
  %694 = vmatprep.subr.bf16.mxu0 0
  %695 = vmatpush1.bf16.msra.mxu0 %v513
  %696 = vmatprep.subr.bf16.mxu0 0
  %697 = vmatpush1.bf16.msra.mxu0 %v512
  %698 = vmatprep.subr.bf16.mxu0 0
  %699 = vmatpush1.bf16.msra.mxu0 %v511
  %700 = vmatprep.subr.bf16.mxu0 0
  %701 = vmatpush1.bf16.msra.mxu0 %v510
  %702 = vmatprep.subr.bf16.mxu0 0
  %703 = vmatpush2.bf16.msra.mxu0 %v525
  %704 = vmatprep.subr.bf16.mxu0 0
  %705 = vmatpush2.bf16.msra.mxu0 %v524
  %706 = vmatprep.subr.bf16.mxu0 0
  %707 = vmatpush2.bf16.msra.mxu0 %v523
  %708 = vmatprep.subr.bf16.mxu0 0
  %709 = vmatpush2.bf16.msra.mxu0 %v522
  %710 = vmatprep.subr.bf16.mxu0 0
  %711 = vmatpush2.bf16.msra.mxu0 %v521
  %712 = vmatprep.subr.bf16.mxu0 0
  %713 = vmatpush2.bf16.msra.mxu0 %v520
  %714 = vmatprep.subr.bf16.mxu0 0
  %715 = vmatpush2.bf16.msra.mxu0 %v519
  %716 = vmatprep.subr.bf16.mxu0 0
  %717 = vmatpush2.bf16.msra.mxu0 %v518
  %718 = vmatprep.mubr.bf16.mxu0 %v209
  %719 = vmatmul.mubr.bf16.gmra.mxu0 %v195
  %v720 = vpop.f32.mrf.mxu0
  %v721 = vadd.f32 %v681, %v720
  %v722 = vpop.f32.mrf.mxu0
  %v723 = vpop.f32.mrf.mxu0
  %v724 = vpop.f32.mrf.mxu0
  %725 = vdwg.mxu0
  %726 = vmatprep.subr.bf16.mxu0 0
  %727 = vmatpush1.bf16.msra.mxu0 %v533
  %728 = vmatprep.subr.bf16.mxu0 0
  %729 = vmatpush1.bf16.msra.mxu0 %v532
  %730 = vmatprep.subr.bf16.mxu0 0
  %731 = vmatpush1.bf16.msra.mxu0 %v531
  %732 = vmatprep.subr.bf16.mxu0 0
  %733 = vmatpush1.bf16.msra.mxu0 %v530
  %734 = vmatprep.subr.bf16.mxu0 0
  %735 = vmatpush1.bf16.msra.mxu0 %v529
  %736 = vmatprep.subr.bf16.mxu0 0
  %737 = vmatpush1.bf16.msra.mxu0 %v528
  %738 = vmatprep.subr.bf16.mxu0 0
  %739 = vmatpush1.bf16.msra.mxu0 %v527
  %740 = vmatprep.subr.bf16.mxu0 0
  %741 = vmatpush1.bf16.msra.mxu0 %v526
  %742 = vmatprep.subr.bf16.mxu0 0
  %743 = vmatpush2.bf16.msra.mxu0 %v541
  %744 = vmatprep.subr.bf16.mxu0 0
  %745 = vmatpush2.bf16.msra.mxu0 %v540
  %746 = vmatprep.subr.bf16.mxu0 0
  %747 = vmatpush2.bf16.msra.mxu0 %v539
  %748 = vmatprep.subr.bf16.mxu0 0
  %749 = vmatpush2.bf16.msra.mxu0 %v538
  %750 = vmatprep.subr.bf16.mxu0 0
  %751 = vmatpush2.bf16.msra.mxu0 %v537
  %752 = vmatprep.subr.bf16.mxu0 0
  %753 = vmatpush2.bf16.msra.mxu0 %v536
  %754 = vmatprep.subr.bf16.mxu0 0
  %755 = vmatpush2.bf16.msra.mxu0 %v535
  %756 = vmatprep.subr.bf16.mxu0 0
  %757 = vmatpush2.bf16.msra.mxu0 %v534
  %758 = vmatprep.mubr.bf16.mxu0 %v213
  %759 = vmatmul.mubr.bf16.gmra.mxu0 %v211
  %v760 = vpop.f32.mrf.mxu0
  %v761 = vadd.f32 %v721, %v760
  %v762 = vpop.f32.mrf.mxu0
  %v763 = vpop.f32.mrf.mxu0
  %v764 = vpop.f32.mrf.mxu0
  %765 = vdwg.mxu0
  %v766 = vtanh.pop %v761
  %v767 = vld [vmem:[%s3] sm:$0xff]
  %v768 = vld [vmem:[%s3 + $0x8] sm:$0xff]
  %v769 = vld [vmem:[%s3 + $0x10] sm:$0xff]
  %v770 = vld [vmem:[%s3 + $0x18] sm:$0xff]
  %v771 = vld [vmem:[%s3 + $0x20] sm:$0xff]
  %v772 = vld [vmem:[%s3 + $0x28] sm:$0xff]
  %v773 = vld [vmem:[%s3 + $0x30] sm:$0xff]
  %v774 = vld [vmem:[%s3 + $0x38] sm:$0xff]
  %v775 = vld [vmem:[%s4] sm:$0x1]
  %v777 = vlaneseq
  %v778 = vshrl.u32 %v777, 7
  %v779 = vsub.s32 0, %v778
  %v780 = vrot.slane %v775, %v779
  %vm782 = vcmask 523264
  %v784 = vsel %vm782, %v766, 0
  %786 = vmatprep.subr.mxu0 0.0
  %787 = vmatpush1.msra.mxu0 0.0
  %788 = vmatprep.subr.mxu0 0.0
  %789 = vmatpush1.msra.mxu0 0.0
  %790 = vmatprep.subr.mxu0 0.0
  %791 = vmatpush1.msra.mxu0 0.0
  %792 = vmatprep.subr.mxu0 0.0
  %793 = vmatpush1.msra.mxu0 0.0
  %794 = vmatprep.subr.mxu0 0.0
  %795 = vmatpush1.msra.mxu0 0.0
  %796 = vmatprep.subr.mxu0 0.0
  %797 = vmatpush1.msra.mxu0 0.0
  %798 = vmatprep.subr.mxu0 0.0
  %799 = vmatpush1.msra.mxu0 0.0
  %800 = vmatprep.subr.mxu0 0.0
  %801 = vmatpush1.msra.mxu0 0.0
  %802 = vmatprep.subr.mxu0 0.0
  %803 = vmatpush1.msra.mxu0 %v774
  %804 = vmatprep.subr.mxu0 0.0
  %805 = vmatpush1.msra.mxu0 %v773
  %806 = vmatprep.subr.mxu0 0.0
  %807 = vmatpush1.msra.mxu0 %v772
  %808 = vmatprep.subr.mxu0 0.0
  %809 = vmatpush1.msra.mxu0 %v771
  %810 = vmatprep.subr.mxu0 0.0
  %811 = vmatpush1.msra.mxu0 %v770
  %812 = vmatprep.subr.mxu0 0.0
  %813 = vmatpush1.msra.mxu0 %v769
  %814 = vmatprep.subr.mxu0 0.0
  %815 = vmatpush1.msra.mxu0 %v768
  %816 = vmatprep.subr.mxu0 0.0
  %817 = vmatpush1.msra.mxu0 %v767
  %818 = vmatprep.subr.mxu0 0.0
  %819 = vmatpush2.msra.mxu0 0.0
  %820 = vmatprep.subr.mxu0 0.0
  %821 = vmatpush2.msra.mxu0 0.0
  %822 = vmatprep.subr.mxu0 0.0
  %823 = vmatpush2.msra.mxu0 0.0
  %824 = vmatprep.subr.mxu0 0.0
  %825 = vmatpush2.msra.mxu0 0.0
  %826 = vmatprep.subr.mxu0 0.0
  %827 = vmatpush2.msra.mxu0 0.0
  %828 = vmatprep.subr.mxu0 0.0
  %829 = vmatpush2.msra.mxu0 0.0
  %830 = vmatprep.subr.mxu0 0.0
  %831 = vmatpush2.msra.mxu0 0.0
  %832 = vmatprep.subr.mxu0 0.0
  %833 = vmatpush2.msra.mxu0 0.0
  %834 = vmatprep.subr.mxu0 0.0
  %835 = vmatpush2.msra.mxu0 0.0
  %836 = vmatprep.subr.mxu0 0.0
  %837 = vmatpush2.msra.mxu0 0.0
  %838 = vmatprep.subr.mxu0 0.0
  %839 = vmatpush2.msra.mxu0 0.0
  %840 = vmatprep.subr.mxu0 0.0
  %841 = vmatpush2.msra.mxu0 0.0
  %842 = vmatprep.subr.mxu0 0.0
  %843 = vmatpush2.msra.mxu0 0.0
  %844 = vmatprep.subr.mxu0 0.0
  %845 = vmatpush2.msra.mxu0 0.0
  %846 = vmatprep.subr.mxu0 0.0
  %847 = vmatpush2.msra.mxu0 0.0
  %848 = vmatprep.subr.mxu0 0.0
  %849 = vmatpush2.msra.mxu0 0.0
  %850 = vmatprep.mubr.f32.mxu0 0.0
  %851 = vmatmul.mubr.f32.gmra.mxu0 %v784
  %v852 = vpop.f32.mrf.mxu0
  %v853 = vadd.f32 %v780, %v852
  %v854 = vpop.f32.mrf.mxu0
  %855 = vdwg.mxu0
  %v856 = vtanh.pop %v853
  %v857 = vld [vmem:[%s5] sm:$0xff]
  %v858 = vld [vmem:[%s5 + $0x8] sm:$0xff]
  %v859 = vld [vmem:[%s5 + $0x10] sm:$0xff]
  %v860 = vld [vmem:[%s5 + $0x18] sm:$0xff]
  %s861 = sld [smem:[#allocation2]]
  %v862 = vstv %s861
  %vm863 = vcmask 261120
  %v865 = vsel %vm863, %v856, 0
  %867 = vmatprep.subr.mxu0 0.0
  %868 = vmatpush1.msra.mxu0 0.0
  %869 = vmatprep.subr.mxu0 0.0
  %870 = vmatpush1.msra.mxu0 0.0
  %871 = vmatprep.subr.mxu0 0.0
  %872 = vmatpush1.msra.mxu0 0.0
  %873 = vmatprep.subr.mxu0 0.0
  %874 = vmatpush1.msra.mxu0 0.0
  %875 = vmatprep.subr.mxu0 0.0
  %876 = vmatpush1.msra.mxu0 0.0
  %877 = vmatprep.subr.mxu0 0.0
  %878 = vmatpush1.msra.mxu0 0.0
  %879 = vmatprep.subr.mxu0 0.0
  %880 = vmatpush1.msra.mxu0 0.0
  %881 = vmatprep.subr.mxu0 0.0
  %882 = vmatpush1.msra.mxu0 0.0
  %883 = vmatprep.subr.mxu0 0.0
  %884 = vmatpush1.msra.mxu0 0.0
  %885 = vmatprep.subr.mxu0 0.0
  %886 = vmatpush1.msra.mxu0 0.0
  %887 = vmatprep.subr.mxu0 0.0
  %888 = vmatpush1.msra.mxu0 0.0
  %889 = vmatprep.subr.mxu0 0.0
  %890 = vmatpush1.msra.mxu0 0.0
  %891 = vmatprep.subr.mxu0 0.0
  %892 = vmatpush1.msra.mxu0 %v860
  %893 = vmatprep.subr.mxu0 0.0
  %894 = vmatpush1.msra.mxu0 %v859
  %895 = vmatprep.subr.mxu0 0.0
  %896 = vmatpush1.msra.mxu0 %v858
  %897 = vmatprep.subr.mxu0 0.0
  %898 = vmatpush1.msra.mxu0 %v857
  %899 = vmatprep.subr.mxu0 0.0
  %900 = vmatpush2.msra.mxu0 0.0
  %901 = vmatprep.subr.mxu0 0.0
  %902 = vmatpush2.msra.mxu0 0.0
  %903 = vmatprep.subr.mxu0 0.0
  %904 = vmatpush2.msra.mxu0 0.0
  %905 = vmatprep.subr.mxu0 0.0
  %906 = vmatpush2.msra.mxu0 0.0
  %907 = vmatprep.subr.mxu0 0.0
  %908 = vmatpush2.msra.mxu0 0.0
  %909 = vmatprep.subr.mxu0 0.0
  %910 = vmatpush2.msra.mxu0 0.0
  %911 = vmatprep.subr.mxu0 0.0
  %912 = vmatpush2.msra.mxu0 0.0
  %913 = vmatprep.subr.mxu0 0.0
  %914 = vmatpush2.msra.mxu0 0.0
  %915 = vmatprep.subr.mxu0 0.0
  %916 = vmatpush2.msra.mxu0 0.0
  %917 = vmatprep.subr.mxu0 0.0
  %918 = vmatpush2.msra.mxu0 0.0
  %919 = vmatprep.subr.mxu0 0.0
  %920 = vmatpush2.msra.mxu0 0.0
  %921 = vmatprep.subr.mxu0 0.0
  %922 = vmatpush2.msra.mxu0 0.0
  %923 = vmatprep.subr.mxu0 0.0
  %924 = vmatpush2.msra.mxu0 0.0
  %925 = vmatprep.subr.mxu0 0.0
  %926 = vmatpush2.msra.mxu0 0.0
  %927 = vmatprep.subr.mxu0 0.0
  %928 = vmatpush2.msra.mxu0 0.0
  %929 = vmatprep.subr.mxu0 0.0
  %930 = vmatpush2.msra.mxu0 0.0
  %931 = vmatprep.mubr.f32.mxu0 0.0
  %932 = vmatmul.mubr.f32.gmra.mxu0 %v865
  %v933 = vpop.f32.mrf.mxu0
  %v934 = vadd.f32 %v862, %v933
  %v935 = vpop.f32.mrf.mxu0
  %936 = vdwg.mxu0
  %vm937 = vcmask 1024
  %938 = vst.msk [vmem:[%s7] sm:$0x3] %vm937, %v934
  // Predicated region
  $region30: #{tpu_custom_call.1} parent=0 // pred_check
    _
  $region31: #{tpu_custom_call.1} parent=0 // pred_check_branch
    %940 = sbr.rel (0) target = $region33
  $region32: #{tpu_custom_call.1} parent=0 // pred_region
    _
  $region33: #{tpu_custom_call.1} parent=0 // pred_fallthru
    _
  // Predicated region
  $region34: #{tpu_custom_call.1} parent=0 // pred_check
    _
  $region35: #{tpu_custom_call.1} parent=0 // pred_check_branch
    %942 = sbr.rel (0) target = $region37
  $region36: #{tpu_custom_call.1} parent=0 // pred_region
    _
  $region37: #{tpu_custom_call.1} parent=0 // pred_fallthru
    _

</llo_original>
